<compile_context>
chip_gen: v5e
topology: v5e:2x2
jax: 0.10.0
libtpu: 0.0.40
codegen_flags: <defaults>
</compile_context>

<pallas_src>
import functools
import math

import numpy as np
import jax
import jax.numpy as jnp
from jax.experimental import pallas as pl
from jax.experimental.pallas import tpu as pltpu


def _expnorm_kernel(dist_ref, out_ref, *, beta, pack, num_gaussians,
                    exp_neg_start, chunk):
    # dist_ref: (TR, pack)       pack distance elements per packed output row
    # out_ref:  (TR, pack*G)     lane-dense packed output (128 lanes when G | 128)
    tr, lane_w = out_ref.shape
    g = num_gaussians

    # Gaussian centers, lane-dense: offset_row[0, j*G + k] = exp(-start) + k*step.
    # (When pack > 1, G divides 128 so G is a power of two -> cheap bitwise-and.)
    lane = jax.lax.broadcasted_iota(jnp.int32, (1, lane_w), 1)
    k = jnp.bitwise_and(lane, g - 1) if pack > 1 else lane
    step = (1.0 - exp_neg_start) / (g - 1) if g > 1 else 0.0
    offset_row = exp_neg_start + k.astype(jnp.float32) * step          # (1, lane_w)

    # Row-chunked loop bounds the size of elementwise temporaries (<= chunk x 128 f32)
    # while the grid block (and its DMAs) stays large. All slices are static and
    # 8-row aligned; stores are full lane width.
    for s in range(0, tr, chunk):
        rows_c = min(chunk, tr - s)
        d = dist_ref[s:s + rows_c, :]                                   # (rows_c, pack)
        e = jnp.exp(-d)                                                 # narrow EUP work
        cols = [jnp.broadcast_to(e[:, j:j + 1], (rows_c, g)) for j in range(pack)]
        e_wide = cols[0] if pack == 1 else jnp.concatenate(cols, axis=1)
        diff = e_wide - offset_row
        out_ref[s:s + rows_c, :] = jnp.exp((-beta) * diff * diff).astype(out_ref.dtype)


def expnorm_smearing(dist, start=5.0, num_gaussians=32, tile_rows=4096,
                     out_dtype=jnp.float32):
    """JAX/Pallas equivalent of SAKE expnorm_smearing.forward.

    dist: any-shape float array; flattened like the PyTorch .view(-1, 1).
    returns: (N, num_gaussians) array of `out_dtype`.
    tile_rows: packed rows per grid step (multiple of 8). 4096 (2 MiB f32 output
      tile) is a good default for v5e/v6e; on v7x try 8192-16384 (vmem limit is
      raised automatically). out_dtype=jnp.bfloat16 roughly doubles throughput if
      the consumer tolerates it (kernel is write-bound: 32 outputs per input).
    """
    g = int(num_gaussians)
    exp_neg_start = math.exp(-float(start))
    beta = float((2.0 / g * (1.0 - exp_neg_start)) ** -2.0)

    # Lane-dense packing: `pack` distances share one (pack*G)-lane output row.
    # If G does not divide 128, pack falls back to 1 (partial-width stores: perf
    # cliff, still correct).
    pack = 128 // g if 128 % g == 0 else 1
    lane_w = pack * g

    dist_flat = jnp.asarray(dist, jnp.float32).reshape(-1)
    n = int(dist_flat.shape[0])
    if n == 0:
        return jnp.zeros((0, g), out_dtype)

    cdiv = lambda a, b: -(-a // b)
    rup8 = lambda a: ((a + 7) // 8) * 8

    rows = cdiv(n, pack)
    rows_arr = max(rows, 8)            # keep the array at least one 8-row block tall
    rows8 = rup8(rows_arr)

    # Tile selection: large to amortize per-step overhead, capped so small inputs
    # don't overpad and so the grid has >= 2 steps (feeds both v7x TensorCores).
    tr = max(8, int(tile_rows))
    tr = min(tr, rows8)
    if rows8 >= 16:
        tr = min(tr, rup8(cdiv(rows8, 2)))
    tr = max(8, (tr // 8) * 8)

    grid = (cdiv(rows_arr, tr),)       # ragged last block handled by Pallas clipping

    n_arr = rows_arr * pack
    if n_arr != n:                     # only when n % pack != 0 or n < 8*pack
        dist_flat = jnp.pad(dist_flat, (0, n_arr - n))
    dist_packed = dist_flat.reshape(rows_arr, pack)

    chunk = min(512, tr)

    # VMEM budget: the (tr, pack) dist tile pads to 128 lanes in VMEM (512 B/row),
    # i.e. it costs as much as the output tile. Raise the scoped limit only if a
    # user-requested tile actually needs it (default 4096 fits the 16 MiB default).
    out_tile_b = tr * lane_w * np.dtype(out_dtype).itemsize
    dist_tile_b = tr * max(pack, 128) * 4
    vmem_need = 2 * (out_tile_b + dist_tile_b) + (2 << 20)
    cp_kwargs = dict(dimension_semantics=("parallel",))
    if vmem_need > (14 << 20):
        cp_kwargs["vmem_limit_bytes"] = int(vmem_need)

    out_packed = pl.pallas_call(
        functools.partial(_expnorm_kernel, beta=beta, pack=pack, num_gaussians=g,
                          exp_neg_start=exp_neg_start, chunk=chunk),
        out_shape=jax.ShapeDtypeStruct((rows_arr, lane_w), out_dtype),
        grid_spec=pltpu.PrefetchScalarGridSpec(
            num_scalar_prefetch=0,
            grid=grid,
            in_specs=[pl.BlockSpec((tr, pack), lambda i: (i, 0))],   # dist tile
            out_specs=pl.BlockSpec((tr, lane_w), lambda i: (i, 0)),  # packed output
        ),
        compiler_params=pltpu.CompilerParams(**cp_kwargs),
    )(dist_packed)

    # Un-pack: (rows, pack*G) -> (rows*pack, G) is a row-major view (free).
    out = out_packed.reshape(rows_arr * pack, g)
    if n_arr != n:
        out = out[:n]                  # rare tail case only (n % pack != 0)
    return out


def _reference(dist, start=5.0, num_gaussians=32):
    exp_neg_start = math.exp(-start)
    beta = (2.0 / num_gaussians * (1.0 - exp_neg_start)) ** -2.0
    offset = jnp.linspace(exp_neg_start, 1.0, num_gaussians,
                          dtype=jnp.float32).reshape(1, -1)
    d = jnp.asarray(dist, jnp.float32).reshape(-1, 1)
    return jnp.exp(-beta * (jnp.exp(-d) - offset) ** 2)


if __name__ == "__main__":
    # 1) Pairwise distances for a small graph: 2 batches x 8 x 8 node pairs.
    dist = jax.random.uniform(jax.random.PRNGKey(0), (2, 8, 8), dtype=jnp.float32) * 5.0
    out = jax.block_until_ready(expnorm_smearing(dist, start=5.0, num_gaussians=32))
    ref = _reference(dist, start=5.0, num_gaussians=32)
    assert out.shape == (2 * 8 * 8, 32), out.shape
    assert jnp.max(jnp.abs(out - ref)) < 1e-5

    # 2) Odd-sized input: exercises the pack padding + tail-slice path.
    dist2 = jax.random.uniform(jax.random.PRNGKey(1), (3, 7), dtype=jnp.float32) * 5.0
    out2 = jax.block_until_ready(expnorm_smearing(dist2))
    ref2 = _reference(dist2)
    assert out2.shape == (21, 32), out2.shape
    assert jnp.max(jnp.abs(out2 - ref2)) < 1e-5

    # 3) N not a multiple of the tile: exercises the ragged last grid block
    #    (no tail slice, writes clipped by Pallas).
    dist3 = jax.random.uniform(jax.random.PRNGKey(2), (1000,), dtype=jnp.float32) * 5.0
    out3 = jax.block_until_ready(expnorm_smearing(dist3))
    ref3 = _reference(dist3)
    assert out3.shape == (1000, 32), out3.shape
    assert jnp.max(jnp.abs(out3 - ref3)) < 1e-5

    # 4) bf16 output path (halves HBM writeback); looser tolerance.
    out4 = jax.block_until_ready(expnorm_smearing(dist, out_dtype=jnp.bfloat16))
    assert out4.dtype == jnp.bfloat16
    assert jnp.max(jnp.abs(out4.astype(jnp.float32) - ref)) < 1e-2

    print("KERNEL_OK")
</pallas_src>

<mosaic_0001>
module attributes {stable_mosaic.version = 11 : i64} {
  func.func @_expnorm_kernel(%arg0: i32, %arg1: memref<16x4xf32, #tpu.memory_space<vmem>>, %arg2: memref<16x128xf32, #tpu.memory_space<vmem>>) attributes {dimension_semantics = [#tpu.dimension_semantics<parallel>], iteration_bounds = array<i64: 2>, scalar_prefetch = 0 : i64, scratch_operands = 0 : i64, tpu.core_type = #tpu.core_type<tc>, window_params = [{transform_indices = @transform_0, window_bounds = array<i64: 16, 4>}, {transform_indices = @transform_1, window_bounds = array<i64: 16, 128>}]} {
    %0 = tpu.iota {dimensions = array<i32: 1>} : vector<1x128xi32>
    %c31_i32 = arith.constant 31 : i32
    %1 = vector.broadcast %c31_i32 : i32 to vector<1x128xi32>
    %2 = arith.andi %0, %1 : vector<1x128xi32>
    %3 = arith.sitofp %2 : vector<1x128xi32> to vector<1x128xf32>
    %cst = arith.constant 0.0320407115 : f32
    %4 = vector.broadcast %cst : f32 to vector<1x128xf32>
    %5 = arith.mulf %3, %4 : vector<1x128xf32>
    %cst_0 = arith.constant 0.006737947 : f32
    %6 = vector.broadcast %cst_0 : f32 to vector<1x128xf32>
    %7 = arith.addf %6, %5 : vector<1x128xf32>
    %c0 = arith.constant 0 : index
    %c0_1 = arith.constant 0 : index
    %8 = vector.load %arg1[%c0, %c0_1] : memref<16x4xf32, #tpu.memory_space<vmem>>, vector<16x4xf32>
    %cst_2 = arith.constant 0.000000e+00 : f32
    %9 = vector.broadcast %cst_2 : f32 to vector<16x4xf32>
    %10 = arith.subf %9, %8 : vector<16x4xf32>
    %11 = math.exp %10 : vector<16x4xf32>
    %12 = vector.extract_strided_slice %11 {offsets = [0, 0], sizes = [16, 1], strides = [1, 1]} : vector<16x4xf32> to vector<16x1xf32>
    %13 = vector.shape_cast %12 : vector<16x1xf32> to vector<16x1xf32>
    %14 = vector.broadcast %13 : vector<16x1xf32> to vector<16x32xf32>
    %15 = vector.extract_strided_slice %11 {offsets = [0, 1], sizes = [16, 1], strides = [1, 1]} : vector<16x4xf32> to vector<16x1xf32>
    %16 = vector.shape_cast %15 : vector<16x1xf32> to vector<16x1xf32>
    %17 = vector.broadcast %16 : vector<16x1xf32> to vector<16x32xf32>
    %18 = vector.extract_strided_slice %11 {offsets = [0, 2], sizes = [16, 1], strides = [1, 1]} : vector<16x4xf32> to vector<16x1xf32>
    %19 = vector.shape_cast %18 : vector<16x1xf32> to vector<16x1xf32>
    %20 = vector.broadcast %19 : vector<16x1xf32> to vector<16x32xf32>
    %21 = vector.extract_strided_slice %11 {offsets = [0, 3], sizes = [16, 1], strides = [1, 1]} : vector<16x4xf32> to vector<16x1xf32>
    %22 = vector.shape_cast %21 : vector<16x1xf32> to vector<16x1xf32>
    %23 = vector.broadcast %22 : vector<16x1xf32> to vector<16x32xf32>
    %24 = tpu.concatenate %14, %17, %20, %23 in 1 : vector<16x32xf32>, vector<16x32xf32>, vector<16x32xf32>, vector<16x32xf32> -> vector<16x128xf32>
    %25 = vector.broadcast %7 : vector<1x128xf32> to vector<16x128xf32>
    %26 = arith.subf %24, %25 : vector<16x128xf32>
    %cst_3 = arith.constant -259.485016 : f32
    %27 = vector.broadcast %cst_3 : f32 to vector<16x128xf32>
    %28 = arith.mulf %27, %26 : vector<16x128xf32>
    %29 = arith.mulf %28, %26 : vector<16x128xf32>
    %30 = math.exp %29 : vector<16x128xf32>
    %c0_4 = arith.constant 0 : index
    %c0_5 = arith.constant 0 : index
    %31 = vector.load %arg2[%c0_4, %c0_5] : memref<16x128xf32, #tpu.memory_space<vmem>>, vector<16x128xf32>
    tpu.vector_store %arg2[%c0_4, %c0_5], %30 {strides = array<i32>} : memref<16x128xf32, #tpu.memory_space<vmem>>, vector<16x128xf32>,
    return
  }
  func.func @transform_0(%arg0: i32) -> (i32, i32) {
    %c0_i32 = arith.constant 0 : i32
    %c0_i32_0 = arith.constant 0 : i32
    return %arg0, %c0_i32 : i32, i32
  }
  func.func @transform_1(%arg0: i32) -> (i32, i32) {
    %c0_i32 = arith.constant 0 : i32
    %c0_i32_0 = arith.constant 0 : i32
    return %arg0, %c0_i32 : i32, i32
  }
}

</mosaic_0001>

<llo_original>
// kernel: tpu_custom_call.1
$region0: #{tpu_custom_call.1}
  #allocation0 [shape = 'u32[]', space=smem, size = 0x4, offset = 0x4, fixed_abs, tag = 'smem constant byte address 0x4 - core index']
  #allocation1 [shape = 'u32[72,128]{1,0:T(1,128)}', space=vmem, size = 0x9000, scoped, tag = 'internal scratch']
  %s0 = inlined_call_operand.vmem [shape: f32[32,4], index: 0, kind: input, shape index: {}]
  %s1 = inlined_call_operand.hbm [shape: f32[32,128], index: 1, kind: output, shape index: {}]
  %s2 = sld [smem:[#allocation0]]
  $region37: #{tpu_custom_call.1} parent=0
    _
  %s4 = ssub.s32 1, %s2
  %s5 = scalar_select 0, %s4, %s2
  $region1: #{tpu_custom_call.1} parent=0
    #allocation2 [shape = 'u8[16384]{0}', space=vmem, size = 0x4000, scoped, tag = 'output window, operand 0']
    #allocation3 [shape = 's32[2]{0}', space=sflag, size = 0x8, scoped, tag = 'scoped memory for tpu_custom_call.1']
    %6 = vsyncpa [#allocation3], 0
    %s7 = scalar_lea.sflag [#allocation3], 1
    %8 = vsyncpa %s7, 0
    loop: start=0, step=1, limit=4
    $region2: #{tpu_custom_call.1} parent=1 // loop_pre_header
      _
    $region3: #{tpu_custom_call.1} parent=1 // loop_header
      %s10 = sphi 0, %s14
      %p11 = scmp.ge.s32.totalorder %s10, 4
      %s20 = sphi 0, %s22
      %s23 = sphi 0, %s20
      %s24 = sphi 0, %s23
      %s40 = sphi 0, %s24
      %s46 = sphi 0, %s48
      %s49 = sphi 0, %s46
      %s50 = sphi 0, %s49
      %s66 = sphi 0, %s50
    $region4: #{tpu_custom_call.1} parent=1 // loop_header_branch
      %13 = sbr.rel (%p11) target = $region8
    $region5: #{tpu_custom_call.1} parent=1 // loop_body
      %s15 = ssub.s32 %s10, 1
      %s16 = ssub.s32 %s10, 2
      %s17 = sadd.s32 %s10, 1
      %s18 = ssub.s32 %s10, %s17
      %p19 = scmp.eq.s32.totalorder %s18, 0
      %s21 = sadd.s32 %s20, 1
      %s22 = scalar_select %p19, %s20, %s21
      %p25 = pneg %p19
      %p26 = scmp.eq.s32.totalorder %s10, 1
      %p27 = por %p25, %p26
      %p28 = scmp.ne.s32.totalorder %s20, %s23
      %p29 = scmp.eq.s32.totalorder %s10, 0
      %p30 = por %p28, %p29
      %p31 = scmp.ne.s32.totalorder %s20, %s23
      %p32 = scmp.eq.s32.totalorder %s15, 1
      %p33 = por %p31, %p32
      %p34 = scmp.ne.s32.totalorder %s23, %s24
      %p35 = scmp.eq.s32.totalorder %s15, 0
      %p36 = por %p34, %p35
      %p37 = scmp.ne.s32.totalorder %s23, %s24
      %p38 = scmp.eq.s32.totalorder %s16, 1
      %p39 = por %p37, %p38
      %p41 = scmp.ne.s32.totalorder %s24, %s40
      %p42 = scmp.eq.s32.totalorder %s16, 0
      %p43 = por %p41, %p42
      %s44 = ssub.s32 %s10, %s17
      %p45 = scmp.eq.s32.totalorder %s44, 0
      %s47 = sadd.s32 %s46, 1
      %s48 = scalar_select %p45, %s46, %s47
      %p51 = pneg %p45
      %p52 = scmp.eq.s32.totalorder %s10, 1
      %p53 = por %p51, %p52
      %p54 = scmp.ne.s32.totalorder %s46, %s49
      %p55 = scmp.eq.s32.totalorder %s10, 0
      %p56 = por %p54, %p55
      %p57 = scmp.ne.s32.totalorder %s46, %s49
      %p58 = scmp.eq.s32.totalorder %s15, 1
      %p59 = por %p57, %p58
      %p60 = scmp.ne.s32.totalorder %s49, %s50
      %p61 = scmp.eq.s32.totalorder %s15, 0
      %p62 = por %p60, %p61
      %p63 = scmp.ne.s32.totalorder %s49, %s50
      %p64 = scmp.eq.s32.totalorder %s16, 1
      %p65 = por %p63, %p64
      %p67 = scmp.ne.s32.totalorder %s50, %s66
      %p68 = scmp.eq.s32.totalorder %s16, 0
      %p69 = por %p67, %p68
      %p70 = scmp.le.s32.totalorder 1, %s10
      %p71 = scmp.lt.s32.totalorder %s10, 3
      %p72 = pnand %p70, %p71
      %p73 = pneg %p72
      // Predicated region
      $region9: #{tpu_custom_call.1} parent=5 // pred_check
        _
      $region10: #{tpu_custom_call.1} parent=5 // pred_check_branch
        %75 = sbr.rel (%p72) target = $region12
      $region11: #{tpu_custom_call.1} parent=5 // pred_region
        %s76 = ssub.s32 %s10, 1
      $region12: #{tpu_custom_call.1} parent=5 // pred_fallthru
        _
      %p77 = scmp.lt.s32.totalorder %s10, 2
      // Predicated region
      $region13: #{tpu_custom_call.1} parent=5 // pred_check
        %p78 = pneg %p77
      $region14: #{tpu_custom_call.1} parent=5 // pred_check_branch
        %80 = sbr.rel (%p78) target = $region16
      $region15: #{tpu_custom_call.1} parent=5 // pred_region
        // Predicated region
        $region17: #{tpu_custom_call.1} parent=15 // pred_check
          %p81 = pneg %p30
        $region18: #{tpu_custom_call.1} parent=15 // pred_check_branch
          %83 = sbr.rel (%p81) target = $region20
        $region19: #{tpu_custom_call.1} parent=15 // pred_region
          %s84 = smul.u32 2, %s10
          %p85 = scmp.lt.s32.totalorder %s84, 3
          %s86 = scalar_select %p85, %s84, 3
          %s87 = smul.addr %s86, 8
          %s88 = scalar_lea.vmem %s0, %s87
          %s89 = smul.u32 2, %s10
        $region20: #{tpu_custom_call.1} parent=15 // pred_fallthru
          _
      $region16: #{tpu_custom_call.1} parent=5 // pred_fallthru
        _
      %p90 = scmp.le.s32.totalorder 1, %s10
      %p91 = scmp.lt.s32.totalorder %s10, 3
      %p92 = pnand %p90, %p91
      %p93 = pneg %p92
      // Predicated region
      $region21: #{tpu_custom_call.1} parent=5 // pred_check
        _
      $region22: #{tpu_custom_call.1} parent=5 // pred_check_branch
        %95 = sbr.rel (%p92) target = $region24
      $region23: #{tpu_custom_call.1} parent=5 // pred_region
        %s96 = ssub.s32 %s10, 1
        %s97 = smul.u32 2, %s15
        %p98 = scmp.lt.s32.totalorder %s97, 3
        %s99 = scalar_select %p98, %s97, 3
        %s100 = smul.addr %s99, 8
        %s101 = scalar_lea.vmem %s0, %s100
        %p102 = pneg %p36
        %p103 = pneg %p33
        %p104 = pneg %p62
        %p105 = pneg %p59
        %s106 = sand.u32 %s49, 1
        %s107 = scalar_lea.sflag [#allocation3], %s106
        %s108 = sand.u32 %s49, 1
        %s109 = smul.addr %s108, 16
        %s110 = scalar_lea.vmem [#allocation2], %s109
        %s111 = smul.u32 2, %s15
        %p112 = scmp.lt.s32.totalorder %s111, 3
        %s113 = scalar_select %p112, %s111, 3
        %s114 = smul.addr %s113, 8
        %s115 = scalar_lea.vmem %s0, %s114
        %s116 = smul.u32 2, %s15
        %s117 = smul.u32 2, %s15
        %v118 = vlaneseq
        %v119 = vand.u32 %v118, 127
        %v120 = vand.u32 %v119, 31
        %v121 = vcvt.s32.f32 %v120
        %v122 = vmul.f32 %v121, 0.03204071
        %v123 = vadd.f32 %v122, 0.006737947
        %v124 = vld [vmem:[%s115] sm:$0xff]
        %v125 = vld [vmem:[%s115 + $0x8] sm:$0xff]
        %v126 = vsub.f32 0.0, %v124
        %v127 = vsub.f32 0.0, %v125
        %v128 = vmul.f32 %v126, 1.442695
        %v129 = vpow.pop %v128
        %v130 = vmul.f32 %v127, 1.442695
        %v131 = vpow.pop %v130
        %133 = vset.pattern.permute.xlu0 0
        %134 = vperm.xlu0 %133, %v129
        %v135 = vpop.permute.xlu0 %134
        %138 = vset.pattern.permute.xlu0 0
        %139 = vperm.xlu0 %138, %v131
        %v140 = vpop.permute.xlu0 %139
        %142 = vset.pattern.permute.xlu0 1
        %143 = vperm.xlu0 %142, %v129
        %v144 = vpop.permute.xlu0 %143
        %146 = vset.pattern.permute.xlu0 1
        %147 = vperm.xlu0 %146, %v131
        %v148 = vpop.permute.xlu0 %147
        %150 = vset.pattern.permute.xlu0 2
        %151 = vperm.xlu0 %150, %v129
        %v152 = vpop.permute.xlu0 %151
        %154 = vset.pattern.permute.xlu0 2
        %155 = vperm.xlu0 %154, %v131
        %v156 = vpop.permute.xlu0 %155
        %158 = vset.pattern.permute.xlu0 3
        %159 = vperm.xlu0 %158, %v129
        %v160 = vpop.permute.xlu0 %159
        %162 = vset.pattern.permute.xlu0 3
        %163 = vperm.xlu0 %162, %v131
        %v164 = vpop.permute.xlu0 %163
        %vm166 = vcmask 261120
        %v167 = vsel %vm166, %v135, %v144
        %v168 = vsel %vm166, %v140, %v148
        %vm169 = vcmask 523264
        %v170 = vsel %vm169, %v167, %v152
        %v171 = vsel %vm169, %v168, %v156
        %vm172 = vcmask 785408
        %v173 = vsel %vm172, %v170, %v160
        %v174 = vsel %vm172, %v171, %v164
        %v175 = vsub.f32 %v173, %v123
        %v176 = vsub.f32 %v174, %v123
        %v177 = vmul.f32 %v175, -259.48502
        %v178 = vmul.f32 %v176, -259.48502
        %v179 = vmul.f32 %v177, %v175
        %v180 = vmul.f32 %v178, %v176
        %v181 = vmul.f32 %v179, 1.442695
        %v182 = vpow.pop %v181
        %v183 = vmul.f32 %v180, 1.442695
        %v184 = vpow.pop %v183
        %185 = vst [vmem:[%s110] sm:$0xff] %v182
        %186 = vst [vmem:[%s110 + $0x8] sm:$0xff] %v184
        %s187 = sand.u32 %s49, 1
        %s188 = scalar_lea.sflag [#allocation3], %s187
        %s189 = sand.u32 %s49, 1
        %s190 = smul.addr %s189, 16
        %s191 = scalar_lea.vmem [#allocation2], %s190
        // Predicated region
        $region25: #{tpu_custom_call.1} parent=23 // pred_check
          %p192 = pneg %p59
        $region26: #{tpu_custom_call.1} parent=23 // pred_check_branch
          %194 = sbr.rel (%p192) target = $region28
        $region27: #{tpu_custom_call.1} parent=23 // pred_region
          %s195 = smul.u32 2, %s15
          %197 = vsyncadd %s188, 0
          %s198 = smul.addr %s195, 8
          %s199 = scalar_lea.hbm %s1, %s198
          %s200 = sshll.u32 %s191, 4
          %s201 = int_to_ptr.vmem [resolvable:$true] %s200
          %s202 = sshll.u32 %s199, 4
          %s203 = int_to_ptr.hbm [resolvable:$true] %s202
          %208 = dma.vmem_to_hbm [thread:$0]  %s201, 256, %s203, %s188, 128, 128, 8
        $region28: #{tpu_custom_call.1} parent=23 // pred_fallthru
          _
      $region24: #{tpu_custom_call.1} parent=5 // pred_fallthru
        _
      %p209 = scmp.le.s32.totalorder 2, %s10
      // Predicated region
      $region29: #{tpu_custom_call.1} parent=5 // pred_check
        %p210 = pneg %p209
      $region30: #{tpu_custom_call.1} parent=5 // pred_check_branch
        %212 = sbr.rel (%p210) target = $region32
      $region31: #{tpu_custom_call.1} parent=5 // pred_region
        %s213 = ssub.s32 %s10, 2
        // Predicated region
        $region33: #{tpu_custom_call.1} parent=31 // pred_check
          %p214 = pneg %p65
        $region34: #{tpu_custom_call.1} parent=31 // pred_check_branch
          %216 = sbr.rel (%p214) target = $region36
        $region35: #{tpu_custom_call.1} parent=31 // pred_region
          %s217 = sand.u32 %s50, 1
          %s218 = scalar_lea.sflag [#allocation3], %s217
          %s219 = sand.u32 %s50, 1
          %s220 = smul.addr %s219, 16
          %s221 = scalar_lea.vmem [#allocation2], %s220
          %223 = dma.done %s218, 256
        $region36: #{tpu_custom_call.1} parent=31 // pred_fallthru
          _
      $region32: #{tpu_custom_call.1} parent=5 // pred_fallthru
        _
    $region6: #{tpu_custom_call.1} parent=1 // loop_footer
      %s14 = sadd.s32 1, %s10
    $region7: #{tpu_custom_call.1} parent=1 // loop_footer_branch
      %9 = sbr.rel target = $region3
    $region8: #{tpu_custom_call.1} parent=1 // loop_exit
      _
    %224 = vsyncpa [#allocation3], 1
    %s225 = scalar_lea.sflag [#allocation3], 1
    %226 = vsyncpa %s225, 1

</llo_original>
